<compile_context>
chip_gen: v7x
topology: tpu7x:2x2x1
jax: 0.10.0
libtpu: 0.0.40
codegen_flags: <defaults>
</compile_context>

<pallas_src>
import functools

import jax
import jax.numpy as jnp
from jax.experimental import pallas as pl
from jax.experimental.pallas import tpu as pltpu

STATE_DIM = 3       # Pendulum-v1 observation space
ACTION_DIM = 1      # Pendulum-v1 action space
HIDDEN_DIM = 128
IN_DIM = STATE_DIM + ACTION_DIM     # 4

# Packed layer-1 buffer layout: rows of a (IN_DIM + 3, HIDDEN) f32 array.
#   rows 0 .. IN_DIM-1 : W1 stored (in_features, out_features)
#   row  IN_DIM        : b1
#   row  IN_DIM + 1    : b2
#   row  IN_DIM + 2    : [b3, 0, 0, ...]
_ROW_B1 = IN_DIM
_ROW_B2 = IN_DIM + 1
_ROW_B3 = IN_DIM + 2
_PACKED_ROWS = IN_DIM + 3


def _qvalue_kernel(x_ref, a_ref, w1b_ref, w2_ref, w3_ref, out_ref):
    x = x_ref[...]                           # (TB, STATE_DIM)  f32
    a = a_ref[...]                           # (TB, ACTION_DIM) f32

    # ---- Layer 1 (fused concat). K = 4 is too small to feed the MXU usefully, so
    # the contraction is done as broadcast multiply-adds on the VPU, seeded by b1.
    h1 = x[:, 0:1] * w1b_ref[0:1, :] + w1b_ref[_ROW_B1:_ROW_B1 + 1, :]
    for k in range(1, STATE_DIM):
        h1 = h1 + x[:, k:k + 1] * w1b_ref[k:k + 1, :]
    for k in range(ACTION_DIM):
        h1 = h1 + a[:, k:k + 1] * w1b_ref[STATE_DIM + k:STATE_DIM + k + 1, :]
    h1 = jnp.maximum(h1, 0.0)                # (TB, HIDDEN) f32

    # ---- Layer 2: bf16 MXU matmul, f32 accumulation; bias/ReLU kept in f32.
    h2 = jnp.dot(h1.astype(w2_ref.dtype), w2_ref[...],
                 preferred_element_type=jnp.float32)
    h2 = jnp.maximum(h2 + w1b_ref[_ROW_B2:_ROW_B2 + 1, :], 0.0)

    # ---- Output head: (TB, HIDDEN) @ (HIDDEN, 1) + b3.
    q = jnp.dot(h2.astype(w3_ref.dtype), w3_ref[...],
                preferred_element_type=jnp.float32)
    out_ref[...] = (q + w1b_ref[_ROW_B3:_ROW_B3 + 1, 0:1]).astype(out_ref.dtype)


def _round_up(n, m):
    return ((n + m - 1) // m) * m


def qvalue_forward(x, a, params, *, tile_b=128):
    """x: (B, STATE_DIM) f32, a: (B, ACTION_DIM) f32 -> (B, 1) f32."""
    w1b, w2, w3 = params
    B = x.shape[0]

    tb = min(tile_b, _round_up(B, 8))        # batch tile, multiple of 8 sublanes
    Bp = _round_up(B, tb)
    if Bp != B:
        pad = Bp - B
        x = jnp.pad(x, ((0, pad), (0, 0)))
        a = jnp.pad(a, ((0, pad), (0, 0)))

    out = pl.pallas_call(
        _qvalue_kernel,
        out_shape=jax.ShapeDtypeStruct((Bp, 1), jnp.float32),
        grid_spec=pltpu.PrefetchScalarGridSpec(
            num_scalar_prefetch=0,
            grid=(Bp // tb,),
            in_specs=[
                pl.BlockSpec((tb, STATE_DIM), lambda i: (i, 0)),          # x tile
                pl.BlockSpec((tb, ACTION_DIM), lambda i: (i, 0)),         # a tile
                pl.BlockSpec((_PACKED_ROWS, HIDDEN_DIM), lambda i: (0, 0)),  # W1+biases
                pl.BlockSpec((HIDDEN_DIM, HIDDEN_DIM), lambda i: (0, 0)),    # W2 (bf16)
                pl.BlockSpec((HIDDEN_DIM, 1), lambda i: (0, 0)),             # W3 (bf16)
            ],
            out_specs=pl.BlockSpec((tb, 1), lambda i: (i, 0)),
        ),
        compiler_params=pltpu.CompilerParams(
            dimension_semantics=("parallel",)),
    )(x, a, w1b, w2, w3)
    return out[:B]


def init_params(key):
    """PyTorch nn.Linear default init; returns (kernel_params, reference_params)."""
    ks = jax.random.split(key, 6)

    def lin(kw, kb, fan_in, fan_out):
        bound = float(fan_in) ** -0.5
        w = jax.random.uniform(kw, (fan_in, fan_out), jnp.float32, -bound, bound)
        b = jax.random.uniform(kb, (fan_out,), jnp.float32, -bound, bound)
        return w, b

    w1, b1 = lin(ks[0], ks[1], IN_DIM, HIDDEN_DIM)
    w2, b2 = lin(ks[2], ks[3], HIDDEN_DIM, HIDDEN_DIM)
    w3, b3 = lin(ks[4], ks[5], HIDDEN_DIM, 1)

    b3_row = jnp.zeros((HIDDEN_DIM,), jnp.float32).at[0].set(b3[0])
    w1b = jnp.concatenate(
        [w1, b1[None, :], b2[None, :], b3_row[None, :]], axis=0)   # (IN_DIM+3, H) f32

    kernel_params = (w1b, w2.astype(jnp.bfloat16), w3.astype(jnp.bfloat16))
    ref_params = (w1, b1, w2, b2, w3, b3)
    return kernel_params, ref_params


def _reference_f32(x, a, ref_params):
    w1, b1, w2, b2, w3, b3 = ref_params
    xa = jnp.concatenate([x, a], axis=1)
    h1 = jax.nn.relu(xa @ w1 + b1)
    h2 = jax.nn.relu(h1 @ w2 + b2)
    return h2 @ w3 + b3


def _reference_bf16(x, a, ref_params):
    """Reference applying the same bf16-operand / f32-accumulate matmuls as the kernel."""
    w1, b1, w2, b2, w3, b3 = ref_params
    xa = jnp.concatenate([x, a], axis=1)
    h1 = jax.nn.relu(xa @ w1 + b1)
    h2 = jax.nn.relu(jnp.dot(h1.astype(jnp.bfloat16), w2.astype(jnp.bfloat16),
                             preferred_element_type=jnp.float32) + b2)
    return jnp.dot(h2.astype(jnp.bfloat16), w3.astype(jnp.bfloat16),
                   preferred_element_type=jnp.float32) + b3


if __name__ == "__main__":
    key = jax.random.PRNGKey(0)
    kx, ka, kp = jax.random.split(key, 3)

    kernel_params, ref_params = init_params(kp)
    fwd = jax.jit(functools.partial(qvalue_forward, tile_b=128))

    # SAC-sized training minibatch: grid = (256 // 128,) = (2,) batch tiles.
    B = 256
    x = jax.random.normal(kx, (B, STATE_DIM), jnp.float32)
    a = 2.0 * jax.random.uniform(ka, (B, ACTION_DIM), jnp.float32, -1.0, 1.0)

    q = jax.block_until_ready(fwd(x, a, kernel_params))
    assert q.shape == (B, 1)
    assert jnp.allclose(q, _reference_bf16(x, a, ref_params), atol=2e-3, rtol=2e-3), \
        "mismatch vs bf16-matched reference"
    assert jnp.allclose(q, _reference_f32(x, a, ref_params), atol=5e-2, rtol=5e-2), \
        "mismatch vs f32 reference"

    # Small per-step inference batch (B=8) exercises the single-tile path.
    xs, as_ = x[:8], a[:8]
    q8 = jax.block_until_ready(qvalue_forward(xs, as_, kernel_params))
    assert q8.shape == (8, 1)
    assert jnp.allclose(q8, _reference_f32(xs, as_, ref_params), atol=5e-2, rtol=5e-2)

    print("KERNEL_OK")
</pallas_src>

<mosaic_0001>
module attributes {stable_mosaic.version = 11 : i64} {
  func.func @_qvalue_kernel(%arg0: i32, %arg1: memref<128x3xf32, #tpu.memory_space<vmem>>, %arg2: memref<128x1xf32, #tpu.memory_space<vmem>>, %arg3: memref<7x128xf32, #tpu.memory_space<vmem>>, %arg4: memref<128x128xbf16, #tpu.memory_space<vmem>>, %arg5: memref<128x1xbf16, #tpu.memory_space<vmem>>, %arg6: memref<128x1xf32, #tpu.memory_space<vmem>>) attributes {dimension_semantics = [#tpu.dimension_semantics<parallel>], iteration_bounds = array<i64: 2>, scalar_prefetch = 0 : i64, scratch_operands = 0 : i64, tpu.core_type = #tpu.core_type<tc>, window_params = [{transform_indices = @transform_0, window_bounds = array<i64: 128, 3>}, {transform_indices = @transform_1, window_bounds = array<i64: 128, 1>}, {pipeline_mode = #tpu.pipeline_mode<synchronous>, transform_indices = @transform_2, window_bounds = array<i64: 7, 128>}, {pipeline_mode = #tpu.pipeline_mode<synchronous>, transform_indices = @transform_3, window_bounds = array<i64: 128, 128>}, {pipeline_mode = #tpu.pipeline_mode<synchronous>, transform_indices = @transform_4, window_bounds = array<i64: 128, 1>}, {transform_indices = @transform_5, window_bounds = array<i64: 128, 1>}]} {
    %c0 = arith.constant 0 : index
    %c0_0 = arith.constant 0 : index
    %0 = vector.load %arg1[%c0, %c0_0] : memref<128x3xf32, #tpu.memory_space<vmem>>, vector<128x3xf32>
    %c0_1 = arith.constant 0 : index
    %c0_2 = arith.constant 0 : index
    %1 = vector.load %arg2[%c0_1, %c0_2] : memref<128x1xf32, #tpu.memory_space<vmem>>, vector<128x1xf32>
    %2 = vector.extract_strided_slice %0 {offsets = [0, 0], sizes = [128, 1], strides = [1, 1]} : vector<128x3xf32> to vector<128x1xf32>
    %c0_3 = arith.constant 0 : index
    %c0_4 = arith.constant 0 : index
    %3 = vector.load %arg3[%c0_3, %c0_4] : memref<7x128xf32, #tpu.memory_space<vmem>>, vector<1x128xf32>
    %4 = vector.broadcast %2 : vector<128x1xf32> to vector<128x128xf32>
    %5 = vector.broadcast %3 : vector<1x128xf32> to vector<128x128xf32>
    %6 = arith.mulf %4, %5 : vector<128x128xf32>
    %c4 = arith.constant 4 : index
    %c0_5 = arith.constant 0 : index
    %7 = vector.load %arg3[%c4, %c0_5] : memref<7x128xf32, #tpu.memory_space<vmem>>, vector<1x128xf32>
    %8 = vector.broadcast %7 : vector<1x128xf32> to vector<128x128xf32>
    %9 = arith.addf %6, %8 : vector<128x128xf32>
    %10 = vector.extract_strided_slice %0 {offsets = [0, 1], sizes = [128, 1], strides = [1, 1]} : vector<128x3xf32> to vector<128x1xf32>
    %c1 = arith.constant 1 : index
    %c0_6 = arith.constant 0 : index
    %11 = vector.load %arg3[%c1, %c0_6] : memref<7x128xf32, #tpu.memory_space<vmem>>, vector<1x128xf32>
    %12 = vector.broadcast %10 : vector<128x1xf32> to vector<128x128xf32>
    %13 = vector.broadcast %11 : vector<1x128xf32> to vector<128x128xf32>
    %14 = arith.mulf %12, %13 : vector<128x128xf32>
    %15 = arith.addf %9, %14 : vector<128x128xf32>
    %16 = vector.extract_strided_slice %0 {offsets = [0, 2], sizes = [128, 1], strides = [1, 1]} : vector<128x3xf32> to vector<128x1xf32>
    %c2 = arith.constant 2 : index
    %c0_7 = arith.constant 0 : index
    %17 = vector.load %arg3[%c2, %c0_7] : memref<7x128xf32, #tpu.memory_space<vmem>>, vector<1x128xf32>
    %18 = vector.broadcast %16 : vector<128x1xf32> to vector<128x128xf32>
    %19 = vector.broadcast %17 : vector<1x128xf32> to vector<128x128xf32>
    %20 = arith.mulf %18, %19 : vector<128x128xf32>
    %21 = arith.addf %15, %20 : vector<128x128xf32>
    %c3 = arith.constant 3 : index
    %c0_8 = arith.constant 0 : index
    %22 = vector.load %arg3[%c3, %c0_8] : memref<7x128xf32, #tpu.memory_space<vmem>>, vector<1x128xf32>
    %23 = vector.broadcast %1 : vector<128x1xf32> to vector<128x128xf32>
    %24 = vector.broadcast %22 : vector<1x128xf32> to vector<128x128xf32>
    %25 = arith.mulf %23, %24 : vector<128x128xf32>
    %26 = arith.addf %21, %25 : vector<128x128xf32>
    %cst = arith.constant 0.000000e+00 : f32
    %27 = vector.broadcast %cst : f32 to vector<128x128xf32>
    %28 = arith.maximumf %26, %27 : vector<128x128xf32>
    %29 = arith.truncf %28 : vector<128x128xf32> to vector<128x128xbf16>
    %c0_9 = arith.constant 0 : index
    %c0_10 = arith.constant 0 : index
    %30 = vector.load %arg4[%c0_9, %c0_10] : memref<128x128xbf16, #tpu.memory_space<vmem>>, vector<128x128xbf16>
    %cst_11 = arith.constant dense<0.000000e+00> : vector<128x128xf32>
    %31 = tpu.matmul %29, %30, %cst_11 {dimension_numbers = #tpu.dot_dimension_numbers<[1], [0], [0], [1], [0, 0, 1, 1], [], []>} : vector<128x128xbf16>, vector<128x128xbf16>, vector<128x128xf32> -> vector<128x128xf32>
    %c5 = arith.constant 5 : index
    %c0_12 = arith.constant 0 : index
    %32 = vector.load %arg3[%c5, %c0_12] : memref<7x128xf32, #tpu.memory_space<vmem>>, vector<1x128xf32>
    %33 = vector.broadcast %32 : vector<1x128xf32> to vector<128x128xf32>
    %34 = arith.addf %31, %33 : vector<128x128xf32>
    %cst_13 = arith.constant 0.000000e+00 : f32
    %35 = vector.broadcast %cst_13 : f32 to vector<128x128xf32>
    %36 = arith.maximumf %34, %35 : vector<128x128xf32>
    %37 = arith.truncf %36 : vector<128x128xf32> to vector<128x128xbf16>
    %c0_14 = arith.constant 0 : index
    %c0_15 = arith.constant 0 : index
    %38 = vector.load %arg5[%c0_14, %c0_15] : memref<128x1xbf16, #tpu.memory_space<vmem>>, vector<128x1xbf16>
    %cst_16 = arith.constant dense<0.000000e+00> : vector<128x1xf32>
    %39 = tpu.matmul %37, %38, %cst_16 {dimension_numbers = #tpu.dot_dimension_numbers<[1], [0], [0], [1], [0, 0, 1, 1], [], []>} : vector<128x128xbf16>, vector<128x1xbf16>, vector<128x1xf32> -> vector<128x1xf32>
    %c6 = arith.constant 6 : index
    %c0_17 = arith.constant 0 : index
    %40 = vector.load %arg3[%c6, %c0_17] : memref<7x128xf32, #tpu.memory_space<vmem>>, vector<1x1xf32>
    %41 = vector.broadcast %40 : vector<1x1xf32> to vector<128x1xf32>
    %42 = arith.addf %39, %41 : vector<128x1xf32>
    %c0_18 = arith.constant 0 : index
    %c0_19 = arith.constant 0 : index
    %43 = vector.load %arg6[%c0_18, %c0_19] : memref<128x1xf32, #tpu.memory_space<vmem>>, vector<128x1xf32>
    tpu.vector_store %arg6[%c0_18, %c0_19], %42 {strides = array<i32>} : memref<128x1xf32, #tpu.memory_space<vmem>>, vector<128x1xf32>,
    return
  }
  func.func @transform_0(%arg0: i32) -> (i32, i32) {
    %c0_i32 = arith.constant 0 : i32
    %c0_i32_0 = arith.constant 0 : i32
    return %arg0, %c0_i32 : i32, i32
  }
  func.func @transform_1(%arg0: i32) -> (i32, i32) {
    %c0_i32 = arith.constant 0 : i32
    %c0_i32_0 = arith.constant 0 : i32
    return %arg0, %c0_i32 : i32, i32
  }
  func.func @transform_2(%arg0: i32) -> (i32, i32) {
    %c0_i32 = arith.constant 0 : i32
    %c0_i32_0 = arith.constant 0 : i32
    %c0_i32_1 = arith.constant 0 : i32
    return %c0_i32, %c0_i32_0 : i32, i32
  }
  func.func @transform_3(%arg0: i32) -> (i32, i32) {
    %c0_i32 = arith.constant 0 : i32
    %c0_i32_0 = arith.constant 0 : i32
    %c0_i32_1 = arith.constant 0 : i32
    return %c0_i32, %c0_i32_0 : i32, i32
  }
  func.func @transform_4(%arg0: i32) -> (i32, i32) {
    %c0_i32 = arith.constant 0 : i32
    %c0_i32_0 = arith.constant 0 : i32
    %c0_i32_1 = arith.constant 0 : i32
    return %c0_i32, %c0_i32_0 : i32, i32
  }
  func.func @transform_5(%arg0: i32) -> (i32, i32) {
    %c0_i32 = arith.constant 0 : i32
    %c0_i32_0 = arith.constant 0 : i32
    return %arg0, %c0_i32 : i32, i32
  }
}

</mosaic_0001>

<llo_original>
// kernel: qvalue_forward.1
$region0: #{qvalue_forward.1}
  #allocation0 [shape = 'u32[]', space=smem, size = 0x4, offset = 0x4, fixed_abs, tag = 'smem constant byte address 0x4 - core index']
  #allocation1 [shape = 'u32[144,128]{1,0:T(1,128)}', space=vmem, size = 0x12000, scoped, tag = 'internal scratch']
  %s0 = inlined_call_operand.vmem [shape: f32[256,3], index: 0, kind: input, shape index: {}]
  %s1 = inlined_call_operand.vmem [shape: f32[256,1], index: 1, kind: input, shape index: {}]
  %s2 = inlined_call_operand.vmem [shape: f32[7,128], index: 2, kind: input, shape index: {}]
  %s3 = inlined_call_operand.vmem [shape: bf16[128,128], index: 3, kind: input, shape index: {}]
  %s4 = inlined_call_operand.vmem [shape: bf16[128,1], index: 4, kind: input, shape index: {}]
  %s5 = inlined_call_operand.vmem [shape: f32[256,1], index: 5, kind: output, shape index: {}]
  %s6 = sld [smem:[#allocation0]]
  $region53: #{qvalue_forward.1} parent=0
    _
  %s8 = ssub.s32 1, %s6
  %s9 = scalar_select 0, %s8, %s6
  loop: start=0, step=1, limit=4
  $region2: #{qvalue_forward.1} parent=0 // loop_pre_header
    _
  $region3: #{qvalue_forward.1} parent=0 // loop_header
    %s11 = sphi 0, %s15
    %p12 = scmp.ge.s32.totalorder %s11, 4
    %s21 = sphi 0, %s23
    %s24 = sphi 0, %s21
    %s25 = sphi 0, %s24
    %s41 = sphi 0, %s25
    %s47 = sphi 0, %s49
    %s50 = sphi 0, %s47
    %s51 = sphi 0, %s50
    %s67 = sphi 0, %s51
    %s71 = sphi 0, %s71
    %s73 = sphi 0, %s71
    %s74 = sphi 0, %s73
    %s88 = sphi 0, %s74
    %s92 = sphi 0, %s92
    %s94 = sphi 0, %s92
    %s95 = sphi 0, %s94
    %s109 = sphi 0, %s95
    %s113 = sphi 0, %s113
    %s115 = sphi 0, %s113
    %s116 = sphi 0, %s115
    %s130 = sphi 0, %s116
    %s136 = sphi 0, %s138
    %s139 = sphi 0, %s136
    %s140 = sphi 0, %s139
    %s156 = sphi 0, %s140
  $region4: #{qvalue_forward.1} parent=0 // loop_header_branch
    %14 = sbr.rel (%p12) target = $region8
  $region5: #{qvalue_forward.1} parent=0 // loop_body
    %s16 = ssub.s32 %s11, 1
    %s17 = ssub.s32 %s11, 2
    %s18 = sadd.s32 %s11, 1
    %s19 = ssub.s32 %s11, %s18
    %p20 = scmp.eq.s32.totalorder %s19, 0
    %s22 = sadd.s32 %s21, 1
    %s23 = scalar_select %p20, %s21, %s22
    %p26 = pneg %p20
    %p27 = scmp.eq.s32.totalorder %s11, 1
    %p28 = por %p26, %p27
    %p29 = scmp.ne.s32.totalorder %s21, %s24
    %p30 = scmp.eq.s32.totalorder %s11, 0
    %p31 = por %p29, %p30
    %p32 = scmp.ne.s32.totalorder %s21, %s24
    %p33 = scmp.eq.s32.totalorder %s16, 1
    %p34 = por %p32, %p33
    %p35 = scmp.ne.s32.totalorder %s24, %s25
    %p36 = scmp.eq.s32.totalorder %s16, 0
    %p37 = por %p35, %p36
    %p38 = scmp.ne.s32.totalorder %s24, %s25
    %p39 = scmp.eq.s32.totalorder %s17, 1
    %p40 = por %p38, %p39
    %p42 = scmp.ne.s32.totalorder %s25, %s41
    %p43 = scmp.eq.s32.totalorder %s17, 0
    %p44 = por %p42, %p43
    %s45 = ssub.s32 %s11, %s18
    %p46 = scmp.eq.s32.totalorder %s45, 0
    %s48 = sadd.s32 %s47, 1
    %s49 = scalar_select %p46, %s47, %s48
    %p52 = pneg %p46
    %p53 = scmp.eq.s32.totalorder %s11, 1
    %p54 = por %p52, %p53
    %p55 = scmp.ne.s32.totalorder %s47, %s50
    %p56 = scmp.eq.s32.totalorder %s11, 0
    %p57 = por %p55, %p56
    %p58 = scmp.ne.s32.totalorder %s47, %s50
    %p59 = scmp.eq.s32.totalorder %s16, 1
    %p60 = por %p58, %p59
    %p61 = scmp.ne.s32.totalorder %s50, %s51
    %p62 = scmp.eq.s32.totalorder %s16, 0
    %p63 = por %p61, %p62
    %p64 = scmp.ne.s32.totalorder %s50, %s51
    %p65 = scmp.eq.s32.totalorder %s17, 1
    %p66 = por %p64, %p65
    %p68 = scmp.ne.s32.totalorder %s51, %s67
    %p69 = scmp.eq.s32.totalorder %s17, 0
    %p70 = por %p68, %p69
    %s72 = sadd.s32 %s71, 1
    %p75 = scmp.eq.s32.totalorder %s11, 1
    %p76 = scmp.ne.s32.totalorder %s71, %s73
    %p77 = scmp.eq.s32.totalorder %s11, 0
    %p78 = por %p76, %p77
    %p79 = scmp.ne.s32.totalorder %s71, %s73
    %p80 = scmp.eq.s32.totalorder %s16, 1
    %p81 = por %p79, %p80
    %p82 = scmp.ne.s32.totalorder %s73, %s74
    %p83 = scmp.eq.s32.totalorder %s16, 0
    %p84 = por %p82, %p83
    %p85 = scmp.ne.s32.totalorder %s73, %s74
    %p86 = scmp.eq.s32.totalorder %s17, 1
    %p87 = por %p85, %p86
    %p89 = scmp.ne.s32.totalorder %s74, %s88
    %p90 = scmp.eq.s32.totalorder %s17, 0
    %p91 = por %p89, %p90
    %s93 = sadd.s32 %s92, 1
    %p96 = scmp.eq.s32.totalorder %s11, 1
    %p97 = scmp.ne.s32.totalorder %s92, %s94
    %p98 = scmp.eq.s32.totalorder %s11, 0
    %p99 = por %p97, %p98
    %p100 = scmp.ne.s32.totalorder %s92, %s94
    %p101 = scmp.eq.s32.totalorder %s16, 1
    %p102 = por %p100, %p101
    %p103 = scmp.ne.s32.totalorder %s94, %s95
    %p104 = scmp.eq.s32.totalorder %s16, 0
    %p105 = por %p103, %p104
    %p106 = scmp.ne.s32.totalorder %s94, %s95
    %p107 = scmp.eq.s32.totalorder %s17, 1
    %p108 = por %p106, %p107
    %p110 = scmp.ne.s32.totalorder %s95, %s109
    %p111 = scmp.eq.s32.totalorder %s17, 0
    %p112 = por %p110, %p111
    %s114 = sadd.s32 %s113, 1
    %p117 = scmp.eq.s32.totalorder %s11, 1
    %p118 = scmp.ne.s32.totalorder %s113, %s115
    %p119 = scmp.eq.s32.totalorder %s11, 0
    %p120 = por %p118, %p119
    %p121 = scmp.ne.s32.totalorder %s113, %s115
    %p122 = scmp.eq.s32.totalorder %s16, 1
    %p123 = por %p121, %p122
    %p124 = scmp.ne.s32.totalorder %s115, %s116
    %p125 = scmp.eq.s32.totalorder %s16, 0
    %p126 = por %p124, %p125
    %p127 = scmp.ne.s32.totalorder %s115, %s116
    %p128 = scmp.eq.s32.totalorder %s17, 1
    %p129 = por %p127, %p128
    %p131 = scmp.ne.s32.totalorder %s116, %s130
    %p132 = scmp.eq.s32.totalorder %s17, 0
    %p133 = por %p131, %p132
    %s134 = ssub.s32 %s11, %s18
    %p135 = scmp.eq.s32.totalorder %s134, 0
    %s137 = sadd.s32 %s136, 1
    %s138 = scalar_select %p135, %s136, %s137
    %p141 = pneg %p135
    %p142 = scmp.eq.s32.totalorder %s11, 1
    %p143 = por %p141, %p142
    %p144 = scmp.ne.s32.totalorder %s136, %s139
    %p145 = scmp.eq.s32.totalorder %s11, 0
    %p146 = por %p144, %p145
    %p147 = scmp.ne.s32.totalorder %s136, %s139
    %p148 = scmp.eq.s32.totalorder %s16, 1
    %p149 = por %p147, %p148
    %p150 = scmp.ne.s32.totalorder %s139, %s140
    %p151 = scmp.eq.s32.totalorder %s16, 0
    %p152 = por %p150, %p151
    %p153 = scmp.ne.s32.totalorder %s139, %s140
    %p154 = scmp.eq.s32.totalorder %s17, 1
    %p155 = por %p153, %p154
    %p157 = scmp.ne.s32.totalorder %s140, %s156
    %p158 = scmp.eq.s32.totalorder %s17, 0
    %p159 = por %p157, %p158
    %p160 = scmp.le.s32.totalorder 1, %s11
    %p161 = scmp.lt.s32.totalorder %s11, 3
    %p162 = pnand %p160, %p161
    %p163 = pneg %p162
    // Predicated region
    $region9: #{qvalue_forward.1} parent=5 // pred_check
      _
    $region10: #{qvalue_forward.1} parent=5 // pred_check_branch
      %165 = sbr.rel (%p162) target = $region12
    $region11: #{qvalue_forward.1} parent=5 // pred_region
      %s166 = ssub.s32 %s11, 1
      // Predicated region
      $region13: #{qvalue_forward.1} parent=11 // pred_check
        %p167 = pneg %p84
      $region14: #{qvalue_forward.1} parent=11 // pred_check_branch
        %169 = sbr.rel (%p167) target = $region16
      $region15: #{qvalue_forward.1} parent=11 // pred_region
        _
      $region16: #{qvalue_forward.1} parent=11 // pred_fallthru
        _
      // Predicated region
      $region17: #{qvalue_forward.1} parent=11 // pred_check
        %p170 = pneg %p105
      $region18: #{qvalue_forward.1} parent=11 // pred_check_branch
        %172 = sbr.rel (%p170) target = $region20
      $region19: #{qvalue_forward.1} parent=11 // pred_region
        _
      $region20: #{qvalue_forward.1} parent=11 // pred_fallthru
        _
      // Predicated region
      $region21: #{qvalue_forward.1} parent=11 // pred_check
        %p173 = pneg %p126
      $region22: #{qvalue_forward.1} parent=11 // pred_check_branch
        %175 = sbr.rel (%p173) target = $region24
      $region23: #{qvalue_forward.1} parent=11 // pred_region
        _
      $region24: #{qvalue_forward.1} parent=11 // pred_fallthru
        _
    $region12: #{qvalue_forward.1} parent=5 // pred_fallthru
      _
    %p176 = scmp.lt.s32.totalorder %s11, 2
    // Predicated region
    $region25: #{qvalue_forward.1} parent=5 // pred_check
      %p177 = pneg %p176
    $region26: #{qvalue_forward.1} parent=5 // pred_check_branch
      %179 = sbr.rel (%p177) target = $region28
    $region27: #{qvalue_forward.1} parent=5 // pred_region
      // Predicated region
      $region29: #{qvalue_forward.1} parent=27 // pred_check
        %p180 = pneg %p31
      $region30: #{qvalue_forward.1} parent=27 // pred_check_branch
        %182 = sbr.rel (%p180) target = $region32
      $region31: #{qvalue_forward.1} parent=27 // pred_region
        %s183 = smul.u32 16, %s11
        %p184 = scmp.lt.s32.totalorder %s183, 31
        %s185 = scalar_select %p184, %s183, 31
        %s186 = smul.addr %s185, 8
        %s187 = scalar_lea.vmem %s0, %s186
        %s188 = smul.u32 16, %s11
      $region32: #{qvalue_forward.1} parent=27 // pred_fallthru
        _
      // Predicated region
      $region33: #{qvalue_forward.1} parent=27 // pred_check
        %p189 = pneg %p57
      $region34: #{qvalue_forward.1} parent=27 // pred_check_branch
        %191 = sbr.rel (%p189) target = $region36
      $region35: #{qvalue_forward.1} parent=27 // pred_region
        %s192 = smul.u32 16, %s11
        %p193 = scmp.lt.s32.totalorder %s192, 31
        %s194 = scalar_select %p193, %s192, 31
        %s195 = smul.addr %s194, 8
        %s196 = scalar_lea.vmem %s1, %s195
        %s197 = smul.u32 16, %s11
      $region36: #{qvalue_forward.1} parent=27 // pred_fallthru
        _
    $region28: #{qvalue_forward.1} parent=5 // pred_fallthru
      _
    %p198 = scmp.le.s32.totalorder 1, %s11
    %p199 = scmp.lt.s32.totalorder %s11, 3
    %p200 = pnand %p198, %p199
    %p201 = pneg %p200
    // Predicated region
    $region37: #{qvalue_forward.1} parent=5 // pred_check
      _
    $region38: #{qvalue_forward.1} parent=5 // pred_check_branch
      %203 = sbr.rel (%p200) target = $region40
    $region39: #{qvalue_forward.1} parent=5 // pred_region
      %s204 = ssub.s32 %s11, 1
      %s205 = smul.u32 16, %s16
      %p206 = scmp.lt.s32.totalorder %s205, 31
      %s207 = scalar_select %p206, %s205, 31
      %s208 = smul.addr %s207, 8
      %s209 = scalar_lea.vmem %s0, %s208
      %p210 = pneg %p37
      %p211 = pneg %p34
      %s212 = smul.u32 16, %s16
      %p213 = scmp.lt.s32.totalorder %s212, 31
      %s214 = scalar_select %p213, %s212, 31
      %s215 = smul.addr %s214, 8
      %s216 = scalar_lea.vmem %s1, %s215
      %p217 = pneg %p63
      %p218 = pneg %p60
      %p219 = pneg %p84
      %p220 = pneg %p81
      %p221 = pneg %p105
      %p222 = pneg %p102
      %p223 = pneg %p126
      %p224 = pneg %p123
      %p225 = pneg %p152
      %p226 = pneg %p149
      %s227 = smul.u32 16, %s16
      %p228 = scmp.lt.s32.totalorder %s227, 31
      %s229 = scalar_select %p228, %s227, 31
      %s230 = smul.addr %s229, 8
      %s231 = scalar_lea.vmem %s5, %s230
      %s232 = smul.u32 16, %s16
      %p233 = scmp.lt.s32.totalorder %s232, 31
      %s234 = scalar_select %p233, %s232, 31
      %s235 = smul.addr %s234, 8
      %s236 = scalar_lea.vmem %s0, %s235
      %s237 = smul.u32 16, %s16
      %s238 = smul.u32 16, %s16
      %p239 = scmp.lt.s32.totalorder %s238, 31
      %s240 = scalar_select %p239, %s238, 31
      %s241 = smul.addr %s240, 8
      %s242 = scalar_lea.vmem %s1, %s241
      %s243 = smul.u32 16, %s16
      %s244 = smul.u32 16, %s16
      %p245 = scmp.lt.s32.totalorder %s244, 31
      %s246 = scalar_select %p245, %s244, 31
      %s247 = smul.addr %s246, 8
      %s248 = scalar_lea.vmem %s5, %s247
      %s249 = smul.u32 16, %s16
      %v251 = vld [vmem:[%s236] sm:$0xff]
      %v252 = vld [vmem:[%s236 + $0x8] sm:$0xff]
      %v253 = vld [vmem:[%s236 + $0x10] sm:$0xff]
      %v254 = vld [vmem:[%s236 + $0x18] sm:$0xff]
      %v255 = vld [vmem:[%s236 + $0x20] sm:$0xff]
      %v256 = vld [vmem:[%s236 + $0x28] sm:$0xff]
      %v257 = vld [vmem:[%s236 + $0x30] sm:$0xff]
      %v258 = vld [vmem:[%s236 + $0x38] sm:$0xff]
      %v259 = vld [vmem:[%s236 + $0x40] sm:$0xff]
      %v260 = vld [vmem:[%s236 + $0x48] sm:$0xff]
      %v261 = vld [vmem:[%s236 + $0x50] sm:$0xff]
      %v262 = vld [vmem:[%s236 + $0x58] sm:$0xff]
      %v263 = vld [vmem:[%s236 + $0x60] sm:$0xff]
      %v264 = vld [vmem:[%s236 + $0x68] sm:$0xff]
      %v265 = vld [vmem:[%s236 + $0x70] sm:$0xff]
      %v266 = vld [vmem:[%s236 + $0x78] sm:$0xff]
      %v267 = vld [vmem:[%s242] sm:$0xff]
      %v268 = vld [vmem:[%s242 + $0x8] sm:$0xff]
      %v269 = vld [vmem:[%s242 + $0x10] sm:$0xff]
      %v270 = vld [vmem:[%s242 + $0x18] sm:$0xff]
      %v271 = vld [vmem:[%s242 + $0x20] sm:$0xff]
      %v272 = vld [vmem:[%s242 + $0x28] sm:$0xff]
      %v273 = vld [vmem:[%s242 + $0x30] sm:$0xff]
      %v274 = vld [vmem:[%s242 + $0x38] sm:$0xff]
      %v275 = vld [vmem:[%s242 + $0x40] sm:$0xff]
      %v276 = vld [vmem:[%s242 + $0x48] sm:$0xff]
      %v277 = vld [vmem:[%s242 + $0x50] sm:$0xff]
      %v278 = vld [vmem:[%s242 + $0x58] sm:$0xff]
      %v279 = vld [vmem:[%s242 + $0x60] sm:$0xff]
      %v280 = vld [vmem:[%s242 + $0x68] sm:$0xff]
      %v281 = vld [vmem:[%s242 + $0x70] sm:$0xff]
      %v282 = vld [vmem:[%s242 + $0x78] sm:$0xff]
      %v283 = vld [vmem:[%s2] sm:$0x1]
      %285 = vset.pattern.permute.xlu0 0
      %286 = vperm.xlu0 %285, %v251
      %v287 = vpop.permute.xlu0 %286
      %290 = vset.pattern.permute.xlu0 0
      %291 = vperm.xlu0 %290, %v252
      %v292 = vpop.permute.xlu0 %291
      %295 = vset.pattern.permute.xlu0 0
      %296 = vperm.xlu0 %295, %v253
      %v297 = vpop.permute.xlu0 %296
      %300 = vset.pattern.permute.xlu0 0
      %301 = vperm.xlu0 %300, %v254
      %v302 = vpop.permute.xlu0 %301
      %305 = vset.pattern.permute.xlu0 0
      %306 = vperm.xlu0 %305, %v255
      %v307 = vpop.permute.xlu0 %306
      %310 = vset.pattern.permute.xlu0 0
      %311 = vperm.xlu0 %310, %v256
      %v312 = vpop.permute.xlu0 %311
      %315 = vset.pattern.permute.xlu0 0
      %316 = vperm.xlu0 %315, %v257
      %v317 = vpop.permute.xlu0 %316
      %320 = vset.pattern.permute.xlu0 0
      %321 = vperm.xlu0 %320, %v258
      %v322 = vpop.permute.xlu0 %321
      %325 = vset.pattern.permute.xlu0 0
      %326 = vperm.xlu0 %325, %v259
      %v327 = vpop.permute.xlu0 %326
      %330 = vset.pattern.permute.xlu0 0
      %331 = vperm.xlu0 %330, %v260
      %v332 = vpop.permute.xlu0 %331
      %335 = vset.pattern.permute.xlu0 0
      %336 = vperm.xlu0 %335, %v261
      %v337 = vpop.permute.xlu0 %336
      %340 = vset.pattern.permute.xlu0 0
      %341 = vperm.xlu0 %340, %v262
      %v342 = vpop.permute.xlu0 %341
      %345 = vset.pattern.permute.xlu0 0
      %346 = vperm.xlu0 %345, %v263
      %v347 = vpop.permute.xlu0 %346
      %350 = vset.pattern.permute.xlu0 0
      %351 = vperm.xlu0 %350, %v264
      %v352 = vpop.permute.xlu0 %351
      %355 = vset.pattern.permute.xlu0 0
      %356 = vperm.xlu0 %355, %v265
      %v357 = vpop.permute.xlu0 %356
      %360 = vset.pattern.permute.xlu0 0
      %361 = vperm.xlu0 %360, %v266
      %v362 = vpop.permute.xlu0 %361
      %v364 = vlaneseq
      %v365 = vshrl.u32 %v364, 7
      %v366 = vsub.s32 0, %v365
      %v367 = vrot.slane %v283, %v366
      %v368 = vmul.f32 %v287, %v367
      %v369 = vmul.f32 %v292, %v367
      %v370 = vmul.f32 %v297, %v367
      %v371 = vmul.f32 %v302, %v367
      %v372 = vmul.f32 %v307, %v367
      %v373 = vmul.f32 %v312, %v367
      %v374 = vmul.f32 %v317, %v367
      %v375 = vmul.f32 %v322, %v367
      %v376 = vmul.f32 %v327, %v367
      %v377 = vmul.f32 %v332, %v367
      %v378 = vmul.f32 %v337, %v367
      %v379 = vmul.f32 %v342, %v367
      %v380 = vmul.f32 %v347, %v367
      %v381 = vmul.f32 %v352, %v367
      %v382 = vmul.f32 %v357, %v367
      %v383 = vmul.f32 %v362, %v367
      %v384 = vld [vmem:[%s2 + $0x4] sm:$0x1]
      %v385 = vlaneseq
      %v386 = vshrl.u32 %v385, 7
      %v387 = vsub.s32 0, %v386
      %v388 = vrot.slane %v384, %v387
      %v389 = vadd.f32 %v368, %v388
      %v390 = vadd.f32 %v369, %v388
      %v391 = vadd.f32 %v370, %v388
      %v392 = vadd.f32 %v371, %v388
      %v393 = vadd.f32 %v372, %v388
      %v394 = vadd.f32 %v373, %v388
      %v395 = vadd.f32 %v374, %v388
      %v396 = vadd.f32 %v375, %v388
      %v397 = vadd.f32 %v376, %v388
      %v398 = vadd.f32 %v377, %v388
      %v399 = vadd.f32 %v378, %v388
      %v400 = vadd.f32 %v379, %v388
      %v401 = vadd.f32 %v380, %v388
      %v402 = vadd.f32 %v381, %v388
      %v403 = vadd.f32 %v382, %v388
      %v404 = vadd.f32 %v383, %v388
      %v405 = vld [vmem:[%s2 + $0x1] sm:$0x1]
      %406 = vset.pattern.permute.xlu0 1
      %407 = vperm.xlu0 %406, %v251
      %v408 = vpop.permute.xlu0 %407
      %410 = vset.pattern.permute.xlu0 1
      %411 = vperm.xlu0 %410, %v252
      %v412 = vpop.permute.xlu0 %411
      %414 = vset.pattern.permute.xlu0 1
      %415 = vperm.xlu0 %414, %v253
      %v416 = vpop.permute.xlu0 %415
      %418 = vset.pattern.permute.xlu0 1
      %419 = vperm.xlu0 %418, %v254
      %v420 = vpop.permute.xlu0 %419
      %422 = vset.pattern.permute.xlu0 1
      %423 = vperm.xlu0 %422, %v255
      %v424 = vpop.permute.xlu0 %423
      %426 = vset.pattern.permute.xlu0 1
      %427 = vperm.xlu0 %426, %v256
      %v428 = vpop.permute.xlu0 %427
      %430 = vset.pattern.permute.xlu0 1
      %431 = vperm.xlu0 %430, %v257
      %v432 = vpop.permute.xlu0 %431
      %434 = vset.pattern.permute.xlu0 1
      %435 = vperm.xlu0 %434, %v258
      %v436 = vpop.permute.xlu0 %435
      %438 = vset.pattern.permute.xlu0 1
      %439 = vperm.xlu0 %438, %v259
      %v440 = vpop.permute.xlu0 %439
      %442 = vset.pattern.permute.xlu0 1
      %443 = vperm.xlu0 %442, %v260
      %v444 = vpop.permute.xlu0 %443
      %446 = vset.pattern.permute.xlu0 1
      %447 = vperm.xlu0 %446, %v261
      %v448 = vpop.permute.xlu0 %447
      %450 = vset.pattern.permute.xlu0 1
      %451 = vperm.xlu0 %450, %v262
      %v452 = vpop.permute.xlu0 %451
      %454 = vset.pattern.permute.xlu0 1
      %455 = vperm.xlu0 %454, %v263
      %v456 = vpop.permute.xlu0 %455
      %458 = vset.pattern.permute.xlu0 1
      %459 = vperm.xlu0 %458, %v264
      %v460 = vpop.permute.xlu0 %459
      %462 = vset.pattern.permute.xlu0 1
      %463 = vperm.xlu0 %462, %v265
      %v464 = vpop.permute.xlu0 %463
      %466 = vset.pattern.permute.xlu0 1
      %467 = vperm.xlu0 %466, %v266
      %v468 = vpop.permute.xlu0 %467
      %v470 = vlaneseq
      %v471 = vshrl.u32 %v470, 7
      %v472 = vsub.s32 0, %v471
      %v473 = vrot.slane %v405, %v472
      %v474 = vmul.f32 %v408, %v473
      %v475 = vmul.f32 %v412, %v473
      %v476 = vmul.f32 %v416, %v473
      %v477 = vmul.f32 %v420, %v473
      %v478 = vmul.f32 %v424, %v473
      %v479 = vmul.f32 %v428, %v473
      %v480 = vmul.f32 %v432, %v473
      %v481 = vmul.f32 %v436, %v473
      %v482 = vmul.f32 %v440, %v473
      %v483 = vmul.f32 %v444, %v473
      %v484 = vmul.f32 %v448, %v473
      %v485 = vmul.f32 %v452, %v473
      %v486 = vmul.f32 %v456, %v473
      %v487 = vmul.f32 %v460, %v473
      %v488 = vmul.f32 %v464, %v473
      %v489 = vmul.f32 %v468, %v473
      %v490 = vadd.f32 %v389, %v474
      %v491 = vadd.f32 %v390, %v475
      %v492 = vadd.f32 %v391, %v476
      %v493 = vadd.f32 %v392, %v477
      %v494 = vadd.f32 %v393, %v478
      %v495 = vadd.f32 %v394, %v479
      %v496 = vadd.f32 %v395, %v480
      %v497 = vadd.f32 %v396, %v481
      %v498 = vadd.f32 %v397, %v482
      %v499 = vadd.f32 %v398, %v483
      %v500 = vadd.f32 %v399, %v484
      %v501 = vadd.f32 %v400, %v485
      %v502 = vadd.f32 %v401, %v486
      %v503 = vadd.f32 %v402, %v487
      %v504 = vadd.f32 %v403, %v488
      %v505 = vadd.f32 %v404, %v489
      %v506 = vld [vmem:[%s2 + $0x2] sm:$0x1]
      %507 = vset.pattern.permute.xlu0 2
      %508 = vperm.xlu0 %507, %v251
      %v509 = vpop.permute.xlu0 %508
      %511 = vset.pattern.permute.xlu0 2
      %512 = vperm.xlu0 %511, %v252
      %v513 = vpop.permute.xlu0 %512
      %515 = vset.pattern.permute.xlu0 2
      %516 = vperm.xlu0 %515, %v253
      %v517 = vpop.permute.xlu0 %516
      %519 = vset.pattern.permute.xlu0 2
      %520 = vperm.xlu0 %519, %v254
      %v521 = vpop.permute.xlu0 %520
      %523 = vset.pattern.permute.xlu0 2
      %524 = vperm.xlu0 %523, %v255
      %v525 = vpop.permute.xlu0 %524
      %527 = vset.pattern.permute.xlu0 2
      %528 = vperm.xlu0 %527, %v256
      %v529 = vpop.permute.xlu0 %528
      %531 = vset.pattern.permute.xlu0 2
      %532 = vperm.xlu0 %531, %v257
      %v533 = vpop.permute.xlu0 %532
      %535 = vset.pattern.permute.xlu0 2
      %536 = vperm.xlu0 %535, %v258
      %v537 = vpop.permute.xlu0 %536
      %539 = vset.pattern.permute.xlu0 2
      %540 = vperm.xlu0 %539, %v259
      %v541 = vpop.permute.xlu0 %540
      %543 = vset.pattern.permute.xlu0 2
      %544 = vperm.xlu0 %543, %v260
      %v545 = vpop.permute.xlu0 %544
      %547 = vset.pattern.permute.xlu0 2
      %548 = vperm.xlu0 %547, %v261
      %v549 = vpop.permute.xlu0 %548
      %551 = vset.pattern.permute.xlu0 2
      %552 = vperm.xlu0 %551, %v262
      %v553 = vpop.permute.xlu0 %552
      %555 = vset.pattern.permute.xlu0 2
      %556 = vperm.xlu0 %555, %v263
      %v557 = vpop.permute.xlu0 %556
      %559 = vset.pattern.permute.xlu0 2
      %560 = vperm.xlu0 %559, %v264
      %v561 = vpop.permute.xlu0 %560
      %563 = vset.pattern.permute.xlu0 2
      %564 = vperm.xlu0 %563, %v265
      %v565 = vpop.permute.xlu0 %564
      %567 = vset.pattern.permute.xlu0 2
      %568 = vperm.xlu0 %567, %v266
      %v569 = vpop.permute.xlu0 %568
      %v571 = vlaneseq
      %v572 = vshrl.u32 %v571, 7
      %v573 = vsub.s32 0, %v572
      %v574 = vrot.slane %v506, %v573
      %v575 = vmul.f32 %v509, %v574
      %v576 = vmul.f32 %v513, %v574
      %v577 = vmul.f32 %v517, %v574
      %v578 = vmul.f32 %v521, %v574
      %v579 = vmul.f32 %v525, %v574
      %v580 = vmul.f32 %v529, %v574
      %v581 = vmul.f32 %v533, %v574
      %v582 = vmul.f32 %v537, %v574
      %v583 = vmul.f32 %v541, %v574
      %v584 = vmul.f32 %v545, %v574
      %v585 = vmul.f32 %v549, %v574
      %v586 = vmul.f32 %v553, %v574
      %v587 = vmul.f32 %v557, %v574
      %v588 = vmul.f32 %v561, %v574
      %v589 = vmul.f32 %v565, %v574
      %v590 = vmul.f32 %v569, %v574
      %v591 = vadd.f32 %v490, %v575
      %v592 = vadd.f32 %v491, %v576
      %v593 = vadd.f32 %v492, %v577
      %v594 = vadd.f32 %v493, %v578
      %v595 = vadd.f32 %v494, %v579
      %v596 = vadd.f32 %v495, %v580
      %v597 = vadd.f32 %v496, %v581
      %v598 = vadd.f32 %v497, %v582
      %v599 = vadd.f32 %v498, %v583
      %v600 = vadd.f32 %v499, %v584
      %v601 = vadd.f32 %v500, %v585
      %v602 = vadd.f32 %v501, %v586
      %v603 = vadd.f32 %v502, %v587
      %v604 = vadd.f32 %v503, %v588
      %v605 = vadd.f32 %v504, %v589
      %v606 = vadd.f32 %v505, %v590
      %v607 = vld [vmem:[%s2 + $0x3] sm:$0x1]
      %609 = vset.pattern.permute.xlu0 0
      %610 = vperm.xlu0 %609, %v267
      %v611 = vpop.permute.xlu0 %610
      %614 = vset.pattern.permute.xlu0 0
      %615 = vperm.xlu0 %614, %v268
      %v616 = vpop.permute.xlu0 %615
      %619 = vset.pattern.permute.xlu0 0
      %620 = vperm.xlu0 %619, %v269
      %v621 = vpop.permute.xlu0 %620
      %624 = vset.pattern.permute.xlu0 0
      %625 = vperm.xlu0 %624, %v270
      %v626 = vpop.permute.xlu0 %625
      %629 = vset.pattern.permute.xlu0 0
      %630 = vperm.xlu0 %629, %v271
      %v631 = vpop.permute.xlu0 %630
      %634 = vset.pattern.permute.xlu0 0
      %635 = vperm.xlu0 %634, %v272
      %v636 = vpop.permute.xlu0 %635
      %639 = vset.pattern.permute.xlu0 0
      %640 = vperm.xlu0 %639, %v273
      %v641 = vpop.permute.xlu0 %640
      %644 = vset.pattern.permute.xlu0 0
      %645 = vperm.xlu0 %644, %v274
      %v646 = vpop.permute.xlu0 %645
      %649 = vset.pattern.permute.xlu0 0
      %650 = vperm.xlu0 %649, %v275
      %v651 = vpop.permute.xlu0 %650
      %654 = vset.pattern.permute.xlu0 0
      %655 = vperm.xlu0 %654, %v276
      %v656 = vpop.permute.xlu0 %655
      %659 = vset.pattern.permute.xlu0 0
      %660 = vperm.xlu0 %659, %v277
      %v661 = vpop.permute.xlu0 %660
      %664 = vset.pattern.permute.xlu0 0
      %665 = vperm.xlu0 %664, %v278
      %v666 = vpop.permute.xlu0 %665
      %669 = vset.pattern.permute.xlu0 0
      %670 = vperm.xlu0 %669, %v279
      %v671 = vpop.permute.xlu0 %670
      %674 = vset.pattern.permute.xlu0 0
      %675 = vperm.xlu0 %674, %v280
      %v676 = vpop.permute.xlu0 %675
      %679 = vset.pattern.permute.xlu0 0
      %680 = vperm.xlu0 %679, %v281
      %v681 = vpop.permute.xlu0 %680
      %684 = vset.pattern.permute.xlu0 0
      %685 = vperm.xlu0 %684, %v282
      %v686 = vpop.permute.xlu0 %685
      %v688 = vlaneseq
      %v689 = vshrl.u32 %v688, 7
      %v690 = vsub.s32 0, %v689
      %v691 = vrot.slane %v607, %v690
      %v692 = vmul.f32 %v611, %v691
      %v693 = vmul.f32 %v616, %v691
      %v694 = vmul.f32 %v621, %v691
      %v695 = vmul.f32 %v626, %v691
      %v696 = vmul.f32 %v631, %v691
      %v697 = vmul.f32 %v636, %v691
      %v698 = vmul.f32 %v641, %v691
      %v699 = vmul.f32 %v646, %v691
      %v700 = vmul.f32 %v651, %v691
      %v701 = vmul.f32 %v656, %v691
      %v702 = vmul.f32 %v661, %v691
      %v703 = vmul.f32 %v666, %v691
      %v704 = vmul.f32 %v671, %v691
      %v705 = vmul.f32 %v676, %v691
      %v706 = vmul.f32 %v681, %v691
      %v707 = vmul.f32 %v686, %v691
      %v708 = vadd.f32 %v591, %v692
      %v709 = vadd.f32 %v592, %v693
      %v710 = vadd.f32 %v593, %v694
      %v711 = vadd.f32 %v594, %v695
      %v712 = vadd.f32 %v595, %v696
      %v713 = vadd.f32 %v596, %v697
      %v714 = vadd.f32 %v597, %v698
      %v715 = vadd.f32 %v598, %v699
      %v716 = vadd.f32 %v599, %v700
      %v717 = vadd.f32 %v600, %v701
      %v718 = vadd.f32 %v601, %v702
      %v719 = vadd.f32 %v602, %v703
      %v720 = vadd.f32 %v603, %v704
      %v721 = vadd.f32 %v604, %v705
      %v722 = vadd.f32 %v605, %v706
      %v723 = vadd.f32 %v606, %v707
      %v724 = vmax.f32 %v708, 0.0
      %v725 = vmax.f32 %v709, 0.0
      %v726 = vmax.f32 %v710, 0.0
      %v727 = vmax.f32 %v711, 0.0
      %v728 = vmax.f32 %v712, 0.0
      %v729 = vmax.f32 %v713, 0.0
      %v730 = vmax.f32 %v714, 0.0
      %v731 = vmax.f32 %v715, 0.0
      %v732 = vmax.f32 %v716, 0.0
      %v733 = vmax.f32 %v717, 0.0
      %v734 = vmax.f32 %v718, 0.0
      %v735 = vmax.f32 %v719, 0.0
      %v736 = vmax.f32 %v720, 0.0
      %v737 = vmax.f32 %v721, 0.0
      %v738 = vmax.f32 %v722, 0.0
      %v739 = vmax.f32 %v723, 0.0
      %v740 = vpack.c.bf16 %v725, %v724
      %v741 = vpack.c.bf16 %v727, %v726
      %v742 = vpack.c.bf16 %v729, %v728
      %v743 = vpack.c.bf16 %v731, %v730
      %v744 = vpack.c.bf16 %v733, %v732
      %v745 = vpack.c.bf16 %v735, %v734
      %v746 = vpack.c.bf16 %v737, %v736
      %v747 = vpack.c.bf16 %v739, %v738
      %v748 = vld [vmem:[%s3] sm:$0xf]
      %v749 = vld [vmem:[%s3 + $0x4] sm:$0xf]
      %v750 = vld [vmem:[%s3 + $0x8] sm:$0xf]
      %v751 = vld [vmem:[%s3 + $0xc] sm:$0xf]
      %v752 = vld [vmem:[%s3 + $0x10] sm:$0xf]
      %v753 = vld [vmem:[%s3 + $0x14] sm:$0xf]
      %v754 = vld [vmem:[%s3 + $0x18] sm:$0xf]
      %v755 = vld [vmem:[%s3 + $0x1c] sm:$0xf]
      %v756 = vld [vmem:[%s3 + $0x20] sm:$0xf]
      %v757 = vld [vmem:[%s3 + $0x24] sm:$0xf]
      %v758 = vld [vmem:[%s3 + $0x28] sm:$0xf]
      %v759 = vld [vmem:[%s3 + $0x2c] sm:$0xf]
      %v760 = vld [vmem:[%s3 + $0x30] sm:$0xf]
      %v761 = vld [vmem:[%s3 + $0x34] sm:$0xf]
      %v762 = vld [vmem:[%s3 + $0x38] sm:$0xf]
      %v763 = vld [vmem:[%s3 + $0x3c] sm:$0xf]
      %v764 = vld [vmem:[%s2 + $0x5] sm:$0x1]
      %v765 = vlaneseq
      %v766 = vshrl.u32 %v765, 7
      %v767 = vsub.s32 0, %v766
      %v768 = vrot.slane %v764, %v767
      %v785 = vunpack.c.l.b16 %v748
      %v786 = vunpack.c.l.b16 %v749
      %v787 = vunpack.c.l.b16 %v750
      %v788 = vunpack.c.l.b16 %v751
      %v789 = vunpack.c.l.b16 %v752
      %v790 = vunpack.c.l.b16 %v753
      %v791 = vunpack.c.l.b16 %v754
      %v792 = vunpack.c.l.b16 %v755
      %v793 = vunpack.c.l.b16 %v756
      %v794 = vunpack.c.l.b16 %v757
      %v795 = vunpack.c.l.b16 %v758
      %v796 = vunpack.c.l.b16 %v759
      %v797 = vunpack.c.l.b16 %v760
      %v798 = vunpack.c.l.b16 %v761
      %v799 = vunpack.c.l.b16 %v762
      %v800 = vunpack.c.l.b16 %v763
      %v801 = vpack.c.b16 %v786, %v785
      %v802 = vpack.c.b16 %v788, %v787
      %v803 = vpack.c.b16 %v790, %v789
      %v804 = vpack.c.b16 %v792, %v791
      %v805 = vpack.c.b16 %v794, %v793
      %v806 = vpack.c.b16 %v796, %v795
      %v807 = vpack.c.b16 %v798, %v797
      %v808 = vpack.c.b16 %v800, %v799
      %817 = vmatprep.subr.bf16.mxu0 0
      %818 = vmatpush1.bf16.msra.mxu0 %v801
      %819 = vmatprep.subr.bf16.mxu0 0
      %820 = vmatpush1.bf16.msra.mxu0 %v802
      %821 = vmatprep.subr.bf16.mxu0 0
      %822 = vmatpush1.bf16.msra.mxu0 %v803
      %823 = vmatprep.subr.bf16.mxu0 0
      %824 = vmatpush1.bf16.msra.mxu0 %v804
      %825 = vmatprep.subr.bf16.mxu0 0
      %826 = vmatpush1.bf16.msra.mxu0 %v805
      %827 = vmatprep.subr.bf16.mxu0 0
      %828 = vmatpush1.bf16.msra.mxu0 %v806
      %829 = vmatprep.subr.bf16.mxu0 0
      %830 = vmatpush1.bf16.msra.mxu0 %v807
      %831 = vmatprep.subr.bf16.mxu0 0
      %832 = vmatpush1.bf16.msra.mxu0 %v808
      %833 = vmatprep.subr.bf16.mxu0 0
      %834 = vmatpush1.bf16.msra.mxu0 0
      %835 = vmatprep.subr.bf16.mxu0 0
      %836 = vmatpush1.bf16.msra.mxu0 0
      %837 = vmatprep.subr.bf16.mxu0 0
      %838 = vmatpush1.bf16.msra.mxu0 0
      %839 = vmatprep.subr.bf16.mxu0 0
      %840 = vmatpush1.bf16.msra.mxu0 0
      %841 = vmatprep.subr.bf16.mxu0 0
      %842 = vmatpush1.bf16.msra.mxu0 0
      %843 = vmatprep.subr.bf16.mxu0 0
      %844 = vmatpush1.bf16.msra.mxu0 0
      %845 = vmatprep.subr.bf16.mxu0 0
      %846 = vmatpush1.bf16.msra.mxu0 0
      %847 = vmatprep.subr.bf16.mxu0 0
      %848 = vmatpush1.bf16.msra.mxu0 0
      %849 = vmatprep.mubr.bf16.mxu0 0
      %850 = vmatmul.mubr.bf16.gmra.mrb[0].mxu0 %v740
      %v851 = vpop.f32.mrb[0].mxu0
      %v852 = vadd.f32 %v768, %v851
      %v853 = vpop.f32.mrb[0].mxu0
      %v854 = vpop.f32.mrb[0].mxu0
      %v855 = vadd.f32 %v768, %v854
      %v856 = vpop.f32.mrb[0].mxu0
      %857 = vmatprep.mubr.bf16.mxu0 0
      %858 = vmatmul.mubr.bf16.gmra.mrb[0].mxu0 %v741
      %v859 = vpop.f32.mrb[0].mxu0
      %v860 = vadd.f32 %v768, %v859
      %v861 = vpop.f32.mrb[0].mxu0
      %v862 = vpop.f32.mrb[0].mxu0
      %v863 = vadd.f32 %v768, %v862
      %v864 = vpop.f32.mrb[0].mxu0
      %865 = vmatprep.mubr.bf16.mxu0 0
      %866 = vmatmul.mubr.bf16.gmra.mrb[0].mxu0 %v742
      %v867 = vpop.f32.mrb[0].mxu0
      %v868 = vadd.f32 %v768, %v867
      %v869 = vpop.f32.mrb[0].mxu0
      %v870 = vpop.f32.mrb[0].mxu0
      %v871 = vadd.f32 %v768, %v870
      %v872 = vpop.f32.mrb[0].mxu0
      %873 = vmatprep.mubr.bf16.mxu0 0
      %874 = vmatmul.mubr.bf16.gmra.mrb[0].mxu0 %v743
      %v875 = vpop.f32.mrb[0].mxu0
      %v876 = vadd.f32 %v768, %v875
      %v877 = vpop.f32.mrb[0].mxu0
      %v878 = vpop.f32.mrb[0].mxu0
      %v879 = vadd.f32 %v768, %v878
      %v880 = vpop.f32.mrb[0].mxu0
      %881 = vmatprep.mubr.bf16.mxu0 0
      %882 = vmatmul.mubr.bf16.gmra.mrb[0].mxu0 %v744
      %v883 = vpop.f32.mrb[0].mxu0
      %v884 = vadd.f32 %v768, %v883
      %v885 = vpop.f32.mrb[0].mxu0
      %v886 = vpop.f32.mrb[0].mxu0
      %v887 = vadd.f32 %v768, %v886
      %v888 = vpop.f32.mrb[0].mxu0
      %889 = vmatprep.mubr.bf16.mxu0 0
      %890 = vmatmul.mubr.bf16.gmra.mrb[0].mxu0 %v745
      %v891 = vpop.f32.mrb[0].mxu0
      %v892 = vadd.f32 %v768, %v891
      %v893 = vpop.f32.mrb[0].mxu0
      %v894 = vpop.f32.mrb[0].mxu0
      %v895 = vadd.f32 %v768, %v894
      %v896 = vpop.f32.mrb[0].mxu0
      %897 = vmatprep.mubr.bf16.mxu0 0
      %898 = vmatmul.mubr.bf16.gmra.mrb[0].mxu0 %v746
      %v899 = vpop.f32.mrb[0].mxu0
      %v900 = vadd.f32 %v768, %v899
      %v901 = vpop.f32.mrb[0].mxu0
      %v902 = vpop.f32.mrb[0].mxu0
      %v903 = vadd.f32 %v768, %v902
      %v904 = vpop.f32.mrb[0].mxu0
      %905 = vmatprep.mubr.bf16.mxu0 0
      %906 = vmatmul.mubr.bf16.gmra.mrb[0].mxu0 %v747
      %v907 = vpop.f32.mrb[0].mxu0
      %v908 = vadd.f32 %v768, %v907
      %v909 = vpop.f32.mrb[0].mxu0
      %v910 = vpop.f32.mrb[0].mxu0
      %v911 = vadd.f32 %v768, %v910
      %v912 = vpop.f32.mrb[0].mxu0
      %913 = vdwg.mxu0
      %v914 = vmax.f32 %v852, 0.0
      %v915 = vmax.f32 %v855, 0.0
      %v916 = vmax.f32 %v860, 0.0
      %v917 = vmax.f32 %v863, 0.0
      %v918 = vmax.f32 %v868, 0.0
      %v919 = vmax.f32 %v871, 0.0
      %v920 = vmax.f32 %v876, 0.0
      %v921 = vmax.f32 %v879, 0.0
      %v922 = vmax.f32 %v884, 0.0
      %v923 = vmax.f32 %v887, 0.0
      %v924 = vmax.f32 %v892, 0.0
      %v925 = vmax.f32 %v895, 0.0
      %v926 = vmax.f32 %v900, 0.0
      %v927 = vmax.f32 %v903, 0.0
      %v928 = vmax.f32 %v908, 0.0
      %v929 = vmax.f32 %v911, 0.0
      %v930 = vpack.c.bf16 %v915, %v914
      %v931 = vpack.c.bf16 %v917, %v916
      %v932 = vpack.c.bf16 %v919, %v918
      %v933 = vpack.c.bf16 %v921, %v920
      %v934 = vpack.c.bf16 %v923, %v922
      %v935 = vpack.c.bf16 %v925, %v924
      %v936 = vpack.c.bf16 %v927, %v926
      %v937 = vpack.c.bf16 %v929, %v928
      %v938 = vld [vmem:[%s4] sm:$0xf]
      %v939 = vld [vmem:[%s4 + $0x4] sm:$0xf]
      %v940 = vld [vmem:[%s4 + $0x8] sm:$0xf]
      %v941 = vld [vmem:[%s4 + $0xc] sm:$0xf]
      %v942 = vld [vmem:[%s4 + $0x10] sm:$0xf]
      %v943 = vld [vmem:[%s4 + $0x14] sm:$0xf]
      %v944 = vld [vmem:[%s4 + $0x18] sm:$0xf]
      %v945 = vld [vmem:[%s4 + $0x1c] sm:$0xf]
      %v946 = vld [vmem:[%s4 + $0x20] sm:$0xf]
      %v947 = vld [vmem:[%s4 + $0x24] sm:$0xf]
      %v948 = vld [vmem:[%s4 + $0x28] sm:$0xf]
      %v949 = vld [vmem:[%s4 + $0x2c] sm:$0xf]
      %v950 = vld [vmem:[%s4 + $0x30] sm:$0xf]
      %v951 = vld [vmem:[%s4 + $0x34] sm:$0xf]
      %v952 = vld [vmem:[%s4 + $0x38] sm:$0xf]
      %v953 = vld [vmem:[%s4 + $0x3c] sm:$0xf]
      %v954 = vld [vmem:[%s2 + $0x6] sm:$0x1]
      %v955 = vlaneseq
      %v956 = vshrl.u32 %v955, 7
      %v957 = vsub.s32 0, %v956
      %v958 = vrot.slane %v954, %v957
      %v975 = vunpack.c.l.b16 %v938
      %v976 = vunpack.c.l.b16 %v939
      %v977 = vunpack.c.l.b16 %v940
      %v978 = vunpack.c.l.b16 %v941
      %v979 = vunpack.c.l.b16 %v942
      %v980 = vunpack.c.l.b16 %v943
      %v981 = vunpack.c.l.b16 %v944
      %v982 = vunpack.c.l.b16 %v945
      %v983 = vunpack.c.l.b16 %v946
      %v984 = vunpack.c.l.b16 %v947
      %v985 = vunpack.c.l.b16 %v948
      %v986 = vunpack.c.l.b16 %v949
      %v987 = vunpack.c.l.b16 %v950
      %v988 = vunpack.c.l.b16 %v951
      %v989 = vunpack.c.l.b16 %v952
      %v990 = vunpack.c.l.b16 %v953
      %v991 = vpack.c.b16 %v976, %v975
      %v992 = vpack.c.b16 %v978, %v977
      %v993 = vpack.c.b16 %v980, %v979
      %v994 = vpack.c.b16 %v982, %v981
      %v995 = vpack.c.b16 %v984, %v983
      %v996 = vpack.c.b16 %v986, %v985
      %v997 = vpack.c.b16 %v988, %v987
      %v998 = vpack.c.b16 %v990, %v989
      %1007 = vmatprep.subr.bf16.mxu0 0
      %1008 = vmatpush1.bf16.msra.mxu0 %v991
      %1009 = vmatprep.subr.bf16.mxu0 0
      %1010 = vmatpush1.bf16.msra.mxu0 %v992
      %1011 = vmatprep.subr.bf16.mxu0 0
      %1012 = vmatpush1.bf16.msra.mxu0 %v993
      %1013 = vmatprep.subr.bf16.mxu0 0
      %1014 = vmatpush1.bf16.msra.mxu0 %v994
      %1015 = vmatprep.subr.bf16.mxu0 0
      %1016 = vmatpush1.bf16.msra.mxu0 %v995
      %1017 = vmatprep.subr.bf16.mxu0 0
      %1018 = vmatpush1.bf16.msra.mxu0 %v996
      %1019 = vmatprep.subr.bf16.mxu0 0
      %1020 = vmatpush1.bf16.msra.mxu0 %v997
      %1021 = vmatprep.subr.bf16.mxu0 0
      %1022 = vmatpush1.bf16.msra.mxu0 %v998
      %1023 = vmatprep.subr.bf16.mxu0 0
      %1024 = vmatpush1.bf16.msra.mxu0 0
      %1025 = vmatprep.subr.bf16.mxu0 0
      %1026 = vmatpush1.bf16.msra.mxu0 0
      %1027 = vmatprep.subr.bf16.mxu0 0
      %1028 = vmatpush1.bf16.msra.mxu0 0
      %1029 = vmatprep.subr.bf16.mxu0 0
      %1030 = vmatpush1.bf16.msra.mxu0 0
      %1031 = vmatprep.subr.bf16.mxu0 0
      %1032 = vmatpush1.bf16.msra.mxu0 0
      %1033 = vmatprep.subr.bf16.mxu0 0
      %1034 = vmatpush1.bf16.msra.mxu0 0
      %1035 = vmatprep.subr.bf16.mxu0 0
      %1036 = vmatpush1.bf16.msra.mxu0 0
      %1037 = vmatprep.subr.bf16.mxu0 0
      %1038 = vmatpush1.bf16.msra.mxu0 0
      %1039 = vmatprep.mubr.bf16.mxu0 0
      %1040 = vmatmul.mubr.bf16.gmra.mrb[0].mxu0 %v930
      %v1041 = vpop.f32.mrb[0].mxu0
      %v1042 = vadd.f32 %v958, %v1041
      %v1043 = vpop.f32.mrb[0].mxu0
      %v1044 = vpop.f32.mrb[0].mxu0
      %v1045 = vadd.f32 %v958, %v1044
      %v1046 = vpop.f32.mrb[0].mxu0
      %1047 = vmatprep.mubr.bf16.mxu0 0
      %1048 = vmatmul.mubr.bf16.gmra.mrb[0].mxu0 %v931
      %v1049 = vpop.f32.mrb[0].mxu0
      %v1050 = vadd.f32 %v958, %v1049
      %v1051 = vpop.f32.mrb[0].mxu0
      %v1052 = vpop.f32.mrb[0].mxu0
      %v1053 = vadd.f32 %v958, %v1052
      %v1054 = vpop.f32.mrb[0].mxu0
      %1055 = vmatprep.mubr.bf16.mxu0 0
      %1056 = vmatmul.mubr.bf16.gmra.mrb[0].mxu0 %v932
      %v1057 = vpop.f32.mrb[0].mxu0
      %v1058 = vadd.f32 %v958, %v1057
      %v1059 = vpop.f32.mrb[0].mxu0
      %v1060 = vpop.f32.mrb[0].mxu0
      %v1061 = vadd.f32 %v958, %v1060
      %v1062 = vpop.f32.mrb[0].mxu0
      %1063 = vmatprep.mubr.bf16.mxu0 0
      %1064 = vmatmul.mubr.bf16.gmra.mrb[0].mxu0 %v933
      %v1065 = vpop.f32.mrb[0].mxu0
      %v1066 = vadd.f32 %v958, %v1065
      %v1067 = vpop.f32.mrb[0].mxu0
      %v1068 = vpop.f32.mrb[0].mxu0
      %v1069 = vadd.f32 %v958, %v1068
      %v1070 = vpop.f32.mrb[0].mxu0
      %1071 = vmatprep.mubr.bf16.mxu0 0
      %1072 = vmatmul.mubr.bf16.gmra.mrb[0].mxu0 %v934
      %v1073 = vpop.f32.mrb[0].mxu0
      %v1074 = vadd.f32 %v958, %v1073
      %v1075 = vpop.f32.mrb[0].mxu0
      %v1076 = vpop.f32.mrb[0].mxu0
      %v1077 = vadd.f32 %v958, %v1076
      %v1078 = vpop.f32.mrb[0].mxu0
      %1079 = vmatprep.mubr.bf16.mxu0 0
      %1080 = vmatmul.mubr.bf16.gmra.mrb[0].mxu0 %v935
      %v1081 = vpop.f32.mrb[0].mxu0
      %v1082 = vadd.f32 %v958, %v1081
      %v1083 = vpop.f32.mrb[0].mxu0
      %v1084 = vpop.f32.mrb[0].mxu0
      %v1085 = vadd.f32 %v958, %v1084
      %v1086 = vpop.f32.mrb[0].mxu0
      %1087 = vmatprep.mubr.bf16.mxu0 0
      %1088 = vmatmul.mubr.bf16.gmra.mrb[0].mxu0 %v936
      %v1089 = vpop.f32.mrb[0].mxu0
      %v1090 = vadd.f32 %v958, %v1089
      %v1091 = vpop.f32.mrb[0].mxu0
      %v1092 = vpop.f32.mrb[0].mxu0
      %v1093 = vadd.f32 %v958, %v1092
      %v1094 = vpop.f32.mrb[0].mxu0
      %1095 = vmatprep.mubr.bf16.mxu0 0
      %1096 = vmatmul.mubr.bf16.gmra.mrb[0].mxu0 %v937
      %v1097 = vpop.f32.mrb[0].mxu0
      %v1098 = vadd.f32 %v958, %v1097
      %v1099 = vpop.f32.mrb[0].mxu0
      %v1100 = vpop.f32.mrb[0].mxu0
      %v1101 = vadd.f32 %v958, %v1100
      %v1102 = vpop.f32.mrb[0].mxu0
      %1103 = vdwg.mxu0
      %vm1104 = vcmask 7168
      %1105 = vst.msk [vmem:[%s248] sm:$0xff] %vm1104, %v1042
      %1106 = vst.msk [vmem:[%s248 + $0x8] sm:$0xff] %vm1104, %v1045
      %1107 = vst.msk [vmem:[%s248 + $0x10] sm:$0xff] %vm1104, %v1050
      %1108 = vst.msk [vmem:[%s248 + $0x18] sm:$0xff] %vm1104, %v1053
      %1109 = vst.msk [vmem:[%s248 + $0x20] sm:$0xff] %vm1104, %v1058
      %1110 = vst.msk [vmem:[%s248 + $0x28] sm:$0xff] %vm1104, %v1061
      %1111 = vst.msk [vmem:[%s248 + $0x30] sm:$0xff] %vm1104, %v1066
      %1112 = vst.msk [vmem:[%s248 + $0x38] sm:$0xff] %vm1104, %v1069
      %1113 = vst.msk [vmem:[%s248 + $0x40] sm:$0xff] %vm1104, %v1074
      %1114 = vst.msk [vmem:[%s248 + $0x48] sm:$0xff] %vm1104, %v1077
      %1115 = vst.msk [vmem:[%s248 + $0x50] sm:$0xff] %vm1104, %v1082
      %1116 = vst.msk [vmem:[%s248 + $0x58] sm:$0xff] %vm1104, %v1085
      %1117 = vst.msk [vmem:[%s248 + $0x60] sm:$0xff] %vm1104, %v1090
      %1118 = vst.msk [vmem:[%s248 + $0x68] sm:$0xff] %vm1104, %v1093
      %1119 = vst.msk [vmem:[%s248 + $0x70] sm:$0xff] %vm1104, %v1098
      %1120 = vst.msk [vmem:[%s248 + $0x78] sm:$0xff] %vm1104, %v1101
      %s1121 = smul.u32 16, %s16
      %p1122 = scmp.lt.s32.totalorder %s1121, 31
      %s1123 = scalar_select %p1122, %s1121, 31
      %s1124 = smul.addr %s1123, 8
      %s1125 = scalar_lea.vmem %s5, %s1124
      // Predicated region
      $region41: #{qvalue_forward.1} parent=39 // pred_check
        %p1126 = pneg %p149
      $region42: #{qvalue_forward.1} parent=39 // pred_check_branch
        %1128 = sbr.rel (%p1126) target = $region44
      $region43: #{qvalue_forward.1} parent=39 // pred_region
        %s1129 = smul.u32 16, %s16
      $region44: #{qvalue_forward.1} parent=39 // pred_fallthru
        _
    $region40: #{qvalue_forward.1} parent=5 // pred_fallthru
      _
    %p1130 = scmp.le.s32.totalorder 2, %s11
    // Predicated region
    $region45: #{qvalue_forward.1} parent=5 // pred_check
      %p1131 = pneg %p1130
    $region46: #{qvalue_forward.1} parent=5 // pred_check_branch
      %1133 = sbr.rel (%p1131) target = $region48
    $region47: #{qvalue_forward.1} parent=5 // pred_region
      %s1134 = ssub.s32 %s11, 2
      // Predicated region
      $region49: #{qvalue_forward.1} parent=47 // pred_check
        %p1135 = pneg %p155
      $region50: #{qvalue_forward.1} parent=47 // pred_check_branch
        %1137 = sbr.rel (%p1135) target = $region52
      $region51: #{qvalue_forward.1} parent=47 // pred_region
        %s1138 = smul.u32 16, %s17
        %p1139 = scmp.lt.s32.totalorder %s1138, 31
        %s1140 = scalar_select %p1139, %s1138, 31
        %s1141 = smul.addr %s1140, 8
        %s1142 = scalar_lea.vmem %s5, %s1141
      $region52: #{qvalue_forward.1} parent=47 // pred_fallthru
        _
    $region48: #{qvalue_forward.1} parent=5 // pred_fallthru
      _
  $region6: #{qvalue_forward.1} parent=0 // loop_footer
    %s15 = sadd.s32 1, %s11
  $region7: #{qvalue_forward.1} parent=0 // loop_footer_branch
    %10 = sbr.rel target = $region3
  $region8: #{qvalue_forward.1} parent=0 // loop_exit
    _

</llo_original>
